<compile_context>
chip_gen: v7x
topology: tpu7x:2x2x1
jax: 0.10.0
libtpu: 0.0.40
codegen_flags: <defaults>
</compile_context>

<pallas_src>
import jax
import jax.numpy as jnp
from jax.experimental import pallas as pl
from jax.experimental.pallas import tpu as pltpu

_SUBLANES = 8
_LANES = 128
_TILE_QUANTUM = _SUBLANES * _LANES  # 1024: smallest legal batch tile


def _neuron_kernel(xt_ref, w_ref, b_ref, ot_ref):
    # xt_ref: (n_dims, 8, C)     VMEM  -- batch packed sublane- and lane-dense
    # w_ref : (n_targets, n_dims) SMEM -- PyTorch Linear weight layout, unchanged
    # b_ref : (n_targets,)        SMEM
    # ot_ref: (n_targets, 8, C)   VMEM
    n_dims = xt_ref.shape[0]
    n_targets = ot_ref.shape[0]

    # Load each (8, C) input slab once and upcast to f32 once (reused by every
    # output neuron); compute stays f32 even for bf16 activations.
    xs = [xt_ref[k].astype(jnp.float32) for k in range(n_dims)]

    for t in range(n_targets):  # static unroll over the 3 output neurons
        # Linear layer: n_dims (=5) vector-scalar FMAs on the VPU.  Weights and
        # bias are SMEM scalars, so there are no broadcast shuffles or VMEM
        # traffic for the tiny operands.
        acc = xs[0] * w_ref[t, 0]
        for k in range(1, n_dims):
            acc = acc + xs[k] * w_ref[t, k]
        z = acc + b_ref[t]

        # sigmoid(z) = 1 / (1 + exp(-z)).  Clamp keeps exp(-z) finite so the
        # approx EUP reciprocal never sees inf; one Newton step restores ~f32
        # accuracy (sigmoid(-30) ~ 9e-14, well below f32 resolution near 0).
        d = 1.0 + jnp.exp(-jnp.maximum(z, -30.0))      # EUP exp
        r = pl.reciprocal(d, approx=True)              # EUP vrcp
        r = r * (2.0 - d * r)                          # Newton refinement (VPU)
        ot_ref[t] = r.astype(ot_ref.dtype)


def neuron_forward(x, weight, bias, *, block_b=64 * 1024):
    """x: (B, n_dims), weight: (n_targets, n_dims), bias: (n_targets,).

    Returns sigmoid(x @ weight.T + bias), shape (B, n_targets), dtype of x.
    """
    B, n_dims = x.shape
    n_targets = weight.shape[0]
    q = _TILE_QUANTUM

    # ---- batch tiling -------------------------------------------------------
    # Legal tile sizes are multiples of 1024 (8 sublanes x 128 lanes).
    block_b = max(q, pl.cdiv(int(block_b), q) * q)
    b_min = pl.cdiv(B, q) * q                  # batch padded to a quantum
    tb = min(block_b, b_min)
    # v7x megacore: guarantee >=2 grid steps whenever there are >=2 quanta of
    # work, so the "parallel" grid axis can be sharded across both TensorCores.
    if b_min >= 2 * q:
        tb = min(tb, pl.cdiv(b_min // 2, q) * q)
    # Rebalance so the final tile carries less than one quantum of padding.
    n_tiles = pl.cdiv(b_min, tb)
    tb = pl.cdiv(pl.cdiv(b_min, n_tiles), q) * q
    b_pad = n_tiles * tb
    c = tb // _SUBLANES                        # lane extent of the packed tile

    # ---- wrapper layout plumbing (single fused transpose+pad+reshape pass) --
    xt = x.T                                   # (n_dims, B): batch -> lane axis
    if b_pad != B:
        xt = jnp.pad(xt, ((0, 0), (0, b_pad - B)))
    xt3 = xt.reshape(n_dims, n_tiles * _SUBLANES, c)   # sublane-dense packing

    out3 = pl.pallas_call(
        _neuron_kernel,
        out_shape=jax.ShapeDtypeStruct((n_targets, n_tiles * _SUBLANES, c), x.dtype),
        grid_spec=pl.GridSpec(
            grid=(n_tiles,),
            in_specs=[
                pl.BlockSpec((n_dims, _SUBLANES, c), lambda i: (0, i, 0)),   # x^T tile
                pl.BlockSpec(memory_space=pltpu.MemorySpace.SMEM),           # weight
                pl.BlockSpec(memory_space=pltpu.MemorySpace.SMEM),           # bias
            ],
            out_specs=pl.BlockSpec((n_targets, _SUBLANES, c), lambda i: (0, i, 0)),
        ),
        compiler_params=pltpu.CompilerParams(
            # One batch axis, fully independent tiles -> shardable across the
            # two TensorCores on v7x (no effect on single-TC v5e/v6e).
            dimension_semantics=("parallel",),
        ),
    )(xt3, weight, bias)

    return out3.reshape(n_targets, b_pad)[:, :B].T     # back to (B, n_targets)


if __name__ == "__main__":
    n_dims, n_targets = 5, 3

    key = jax.random.PRNGKey(0)
    kx, kw, kb, kx2 = jax.random.split(key, 4)

    # Deterministic synthetic parameters (matches nn.Linear(5, 3) shapes).
    weight = jax.random.normal(kw, (n_targets, n_dims), dtype=jnp.float32) * 0.5
    bias = jax.random.normal(kb, (n_targets,), dtype=jnp.float32) * 0.5

    def ref_fn(xx):
        return jax.nn.sigmoid(xx.astype(jnp.float32) @ weight.T + bias)

    # Small batch: single (padded) tile.
    x = jax.random.normal(kx, (32, n_dims), dtype=jnp.float32)
    out = jax.block_until_ready(neuron_forward(x, weight, bias))
    assert out.shape == (32, n_targets)
    assert jnp.allclose(out, ref_fn(x), atol=1e-4, rtol=1e-4)

    # Ragged batch exercising a multi-step (3-tile) grid and tail slicing.
    x2 = jax.random.normal(kx2, (2500, n_dims), dtype=jnp.float32)
    out2 = jax.block_until_ready(neuron_forward(x2, weight, bias, block_b=1024))
    assert out2.shape == (2500, n_targets)
    assert jnp.allclose(out2, ref_fn(x2), atol=1e-4, rtol=1e-4)

    # bf16 activations end-to-end (kernel accumulates in f32).
    xb = x.astype(jnp.bfloat16)
    outb = jax.block_until_ready(neuron_forward(xb, weight, bias))
    assert outb.shape == (32, n_targets) and outb.dtype == jnp.bfloat16
    assert jnp.allclose(outb.astype(jnp.float32), ref_fn(xb), atol=2e-2, rtol=2e-2)

    print("KERNEL_OK")
</pallas_src>

<mosaic_0001>
module attributes {stable_mosaic.version = 11 : i64} {
  func.func @_neuron_kernel(%arg0: i32, %arg1: memref<5x8x128xf32, #tpu.memory_space<vmem>>, %arg2: memref<3x5xf32, #tpu.memory_space<smem>>, %arg3: memref<3xf32, #tpu.memory_space<smem>>, %arg4: memref<3x8x128xf32, #tpu.memory_space<vmem>>) attributes {dimension_semantics = [#tpu.dimension_semantics<parallel>], iteration_bounds = array<i64: 1>, scalar_prefetch = 0 : i64, scratch_operands = 0 : i64, tpu.core_type = #tpu.core_type<tc>, window_params = [{transform_indices = @transform_0, window_bounds = array<i64: 5, 8, 128>}, {transform_indices = @transform_1, window_bounds = array<i64: 3, 5>}, {transform_indices = @transform_2, window_bounds = array<i64: 3>}, {transform_indices = @transform_3, window_bounds = array<i64: 3, 8, 128>}]} {
    %c0 = arith.constant 0 : index
    %c0_0 = arith.constant 0 : index
    %c0_1 = arith.constant 0 : index
    %0 = vector.load %arg1[%c0, %c0_0, %c0_1] : memref<5x8x128xf32, #tpu.memory_space<vmem>>, vector<1x8x128xf32>
    %1 = vector.shape_cast %0 : vector<1x8x128xf32> to vector<8x128xf32>
    %c1 = arith.constant 1 : index
    %c0_2 = arith.constant 0 : index
    %c0_3 = arith.constant 0 : index
    %2 = vector.load %arg1[%c1, %c0_2, %c0_3] : memref<5x8x128xf32, #tpu.memory_space<vmem>>, vector<1x8x128xf32>
    %3 = vector.shape_cast %2 : vector<1x8x128xf32> to vector<8x128xf32>
    %c2 = arith.constant 2 : index
    %c0_4 = arith.constant 0 : index
    %c0_5 = arith.constant 0 : index
    %4 = vector.load %arg1[%c2, %c0_4, %c0_5] : memref<5x8x128xf32, #tpu.memory_space<vmem>>, vector<1x8x128xf32>
    %5 = vector.shape_cast %4 : vector<1x8x128xf32> to vector<8x128xf32>
    %c3 = arith.constant 3 : index
    %c0_6 = arith.constant 0 : index
    %c0_7 = arith.constant 0 : index
    %6 = vector.load %arg1[%c3, %c0_6, %c0_7] : memref<5x8x128xf32, #tpu.memory_space<vmem>>, vector<1x8x128xf32>
    %7 = vector.shape_cast %6 : vector<1x8x128xf32> to vector<8x128xf32>
    %c4 = arith.constant 4 : index
    %c0_8 = arith.constant 0 : index
    %c0_9 = arith.constant 0 : index
    %8 = vector.load %arg1[%c4, %c0_8, %c0_9] : memref<5x8x128xf32, #tpu.memory_space<vmem>>, vector<1x8x128xf32>
    %9 = vector.shape_cast %8 : vector<1x8x128xf32> to vector<8x128xf32>
    %c0_10 = arith.constant 0 : index
    %c0_11 = arith.constant 0 : index
    %10 = memref.load %arg2[%c0_10, %c0_11] : memref<3x5xf32, #tpu.memory_space<smem>>
    %11 = vector.broadcast %10 : f32 to vector<8x128xf32>
    %12 = arith.mulf %1, %11 : vector<8x128xf32>
    %c0_12 = arith.constant 0 : index
    %c1_13 = arith.constant 1 : index
    %13 = memref.load %arg2[%c0_12, %c1_13] : memref<3x5xf32, #tpu.memory_space<smem>>
    %14 = vector.broadcast %13 : f32 to vector<8x128xf32>
    %15 = arith.mulf %3, %14 : vector<8x128xf32>
    %16 = arith.addf %12, %15 : vector<8x128xf32>
    %c0_14 = arith.constant 0 : index
    %c2_15 = arith.constant 2 : index
    %17 = memref.load %arg2[%c0_14, %c2_15] : memref<3x5xf32, #tpu.memory_space<smem>>
    %18 = vector.broadcast %17 : f32 to vector<8x128xf32>
    %19 = arith.mulf %5, %18 : vector<8x128xf32>
    %20 = arith.addf %16, %19 : vector<8x128xf32>
    %c0_16 = arith.constant 0 : index
    %c3_17 = arith.constant 3 : index
    %21 = memref.load %arg2[%c0_16, %c3_17] : memref<3x5xf32, #tpu.memory_space<smem>>
    %22 = vector.broadcast %21 : f32 to vector<8x128xf32>
    %23 = arith.mulf %7, %22 : vector<8x128xf32>
    %24 = arith.addf %20, %23 : vector<8x128xf32>
    %c0_18 = arith.constant 0 : index
    %c4_19 = arith.constant 4 : index
    %25 = memref.load %arg2[%c0_18, %c4_19] : memref<3x5xf32, #tpu.memory_space<smem>>
    %26 = vector.broadcast %25 : f32 to vector<8x128xf32>
    %27 = arith.mulf %9, %26 : vector<8x128xf32>
    %28 = arith.addf %24, %27 : vector<8x128xf32>
    %c0_20 = arith.constant 0 : index
    %29 = memref.load %arg3[%c0_20] : memref<3xf32, #tpu.memory_space<smem>>
    %30 = vector.broadcast %29 : f32 to vector<8x128xf32>
    %31 = arith.addf %28, %30 : vector<8x128xf32>
    %cst = arith.constant -3.000000e+01 : f32
    %32 = vector.broadcast %cst : f32 to vector<8x128xf32>
    %33 = arith.maximumf %31, %32 : vector<8x128xf32>
    %cst_21 = arith.constant 0.000000e+00 : f32
    %34 = vector.broadcast %cst_21 : f32 to vector<8x128xf32>
    %35 = arith.subf %34, %33 : vector<8x128xf32>
    %36 = math.exp %35 : vector<8x128xf32>
    %cst_22 = arith.constant 1.000000e+00 : f32
    %37 = vector.broadcast %cst_22 : f32 to vector<8x128xf32>
    %38 = arith.addf %37, %36 : vector<8x128xf32>
    %39 = tpu.reciprocal %38 {approx = true} : vector<8x128xf32> -> vector<8x128xf32>
    %40 = arith.mulf %38, %39 : vector<8x128xf32>
    %cst_23 = arith.constant 2.000000e+00 : f32
    %41 = vector.broadcast %cst_23 : f32 to vector<8x128xf32>
    %42 = arith.subf %41, %40 : vector<8x128xf32>
    %43 = arith.mulf %39, %42 : vector<8x128xf32>
    %c0_24 = arith.constant 0 : index
    %c0_25 = arith.constant 0 : index
    %c0_26 = arith.constant 0 : index
    %44 = vector.load %arg4[%c0_24, %c0_25, %c0_26] : memref<3x8x128xf32, #tpu.memory_space<vmem>>, vector<1x8x128xf32>
    %45 = vector.shape_cast %44 : vector<1x8x128xf32> to vector<8x128xf32>
    %46 = vector.shape_cast %43 : vector<8x128xf32> to vector<1x8x128xf32>
    tpu.vector_store %arg4[%c0_24, %c0_25, %c0_26], %46 {strides = array<i32>} : memref<3x8x128xf32, #tpu.memory_space<vmem>>, vector<1x8x128xf32>,
    %c1_27 = arith.constant 1 : index
    %c0_28 = arith.constant 0 : index
    %47 = memref.load %arg2[%c1_27, %c0_28] : memref<3x5xf32, #tpu.memory_space<smem>>
    %48 = vector.broadcast %47 : f32 to vector<8x128xf32>
    %49 = arith.mulf %1, %48 : vector<8x128xf32>
    %c1_29 = arith.constant 1 : index
    %c1_30 = arith.constant 1 : index
    %50 = memref.load %arg2[%c1_29, %c1_30] : memref<3x5xf32, #tpu.memory_space<smem>>
    %51 = vector.broadcast %50 : f32 to vector<8x128xf32>
    %52 = arith.mulf %3, %51 : vector<8x128xf32>
    %53 = arith.addf %49, %52 : vector<8x128xf32>
    %c1_31 = arith.constant 1 : index
    %c2_32 = arith.constant 2 : index
    %54 = memref.load %arg2[%c1_31, %c2_32] : memref<3x5xf32, #tpu.memory_space<smem>>
    %55 = vector.broadcast %54 : f32 to vector<8x128xf32>
    %56 = arith.mulf %5, %55 : vector<8x128xf32>
    %57 = arith.addf %53, %56 : vector<8x128xf32>
    %c1_33 = arith.constant 1 : index
    %c3_34 = arith.constant 3 : index
    %58 = memref.load %arg2[%c1_33, %c3_34] : memref<3x5xf32, #tpu.memory_space<smem>>
    %59 = vector.broadcast %58 : f32 to vector<8x128xf32>
    %60 = arith.mulf %7, %59 : vector<8x128xf32>
    %61 = arith.addf %57, %60 : vector<8x128xf32>
    %c1_35 = arith.constant 1 : index
    %c4_36 = arith.constant 4 : index
    %62 = memref.load %arg2[%c1_35, %c4_36] : memref<3x5xf32, #tpu.memory_space<smem>>
    %63 = vector.broadcast %62 : f32 to vector<8x128xf32>
    %64 = arith.mulf %9, %63 : vector<8x128xf32>
    %65 = arith.addf %61, %64 : vector<8x128xf32>
    %c1_37 = arith.constant 1 : index
    %66 = memref.load %arg3[%c1_37] : memref<3xf32, #tpu.memory_space<smem>>
    %67 = vector.broadcast %66 : f32 to vector<8x128xf32>
    %68 = arith.addf %65, %67 : vector<8x128xf32>
    %cst_38 = arith.constant -3.000000e+01 : f32
    %69 = vector.broadcast %cst_38 : f32 to vector<8x128xf32>
    %70 = arith.maximumf %68, %69 : vector<8x128xf32>
    %cst_39 = arith.constant 0.000000e+00 : f32
    %71 = vector.broadcast %cst_39 : f32 to vector<8x128xf32>
    %72 = arith.subf %71, %70 : vector<8x128xf32>
    %73 = math.exp %72 : vector<8x128xf32>
    %cst_40 = arith.constant 1.000000e+00 : f32
    %74 = vector.broadcast %cst_40 : f32 to vector<8x128xf32>
    %75 = arith.addf %74, %73 : vector<8x128xf32>
    %76 = tpu.reciprocal %75 {approx = true} : vector<8x128xf32> -> vector<8x128xf32>
    %77 = arith.mulf %75, %76 : vector<8x128xf32>
    %cst_41 = arith.constant 2.000000e+00 : f32
    %78 = vector.broadcast %cst_41 : f32 to vector<8x128xf32>
    %79 = arith.subf %78, %77 : vector<8x128xf32>
    %80 = arith.mulf %76, %79 : vector<8x128xf32>
    %c1_42 = arith.constant 1 : index
    %c0_43 = arith.constant 0 : index
    %c0_44 = arith.constant 0 : index
    %81 = vector.load %arg4[%c1_42, %c0_43, %c0_44] : memref<3x8x128xf32, #tpu.memory_space<vmem>>, vector<1x8x128xf32>
    %82 = vector.shape_cast %81 : vector<1x8x128xf32> to vector<8x128xf32>
    %83 = vector.shape_cast %80 : vector<8x128xf32> to vector<1x8x128xf32>
    tpu.vector_store %arg4[%c1_42, %c0_43, %c0_44], %83 {strides = array<i32>} : memref<3x8x128xf32, #tpu.memory_space<vmem>>, vector<1x8x128xf32>,
    %c2_45 = arith.constant 2 : index
    %c0_46 = arith.constant 0 : index
    %84 = memref.load %arg2[%c2_45, %c0_46] : memref<3x5xf32, #tpu.memory_space<smem>>
    %85 = vector.broadcast %84 : f32 to vector<8x128xf32>
    %86 = arith.mulf %1, %85 : vector<8x128xf32>
    %c2_47 = arith.constant 2 : index
    %c1_48 = arith.constant 1 : index
    %87 = memref.load %arg2[%c2_47, %c1_48] : memref<3x5xf32, #tpu.memory_space<smem>>
    %88 = vector.broadcast %87 : f32 to vector<8x128xf32>
    %89 = arith.mulf %3, %88 : vector<8x128xf32>
    %90 = arith.addf %86, %89 : vector<8x128xf32>
    %c2_49 = arith.constant 2 : index
    %c2_50 = arith.constant 2 : index
    %91 = memref.load %arg2[%c2_49, %c2_50] : memref<3x5xf32, #tpu.memory_space<smem>>
    %92 = vector.broadcast %91 : f32 to vector<8x128xf32>
    %93 = arith.mulf %5, %92 : vector<8x128xf32>
    %94 = arith.addf %90, %93 : vector<8x128xf32>
    %c2_51 = arith.constant 2 : index
    %c3_52 = arith.constant 3 : index
    %95 = memref.load %arg2[%c2_51, %c3_52] : memref<3x5xf32, #tpu.memory_space<smem>>
    %96 = vector.broadcast %95 : f32 to vector<8x128xf32>
    %97 = arith.mulf %7, %96 : vector<8x128xf32>
    %98 = arith.addf %94, %97 : vector<8x128xf32>
    %c2_53 = arith.constant 2 : index
    %c4_54 = arith.constant 4 : index
    %99 = memref.load %arg2[%c2_53, %c4_54] : memref<3x5xf32, #tpu.memory_space<smem>>
    %100 = vector.broadcast %99 : f32 to vector<8x128xf32>
    %101 = arith.mulf %9, %100 : vector<8x128xf32>
    %102 = arith.addf %98, %101 : vector<8x128xf32>
    %c2_55 = arith.constant 2 : index
    %103 = memref.load %arg3[%c2_55] : memref<3xf32, #tpu.memory_space<smem>>
    %104 = vector.broadcast %103 : f32 to vector<8x128xf32>
    %105 = arith.addf %102, %104 : vector<8x128xf32>
    %cst_56 = arith.constant -3.000000e+01 : f32
    %106 = vector.broadcast %cst_56 : f32 to vector<8x128xf32>
    %107 = arith.maximumf %105, %106 : vector<8x128xf32>
    %cst_57 = arith.constant 0.000000e+00 : f32
    %108 = vector.broadcast %cst_57 : f32 to vector<8x128xf32>
    %109 = arith.subf %108, %107 : vector<8x128xf32>
    %110 = math.exp %109 : vector<8x128xf32>
    %cst_58 = arith.constant 1.000000e+00 : f32
    %111 = vector.broadcast %cst_58 : f32 to vector<8x128xf32>
    %112 = arith.addf %111, %110 : vector<8x128xf32>
    %113 = tpu.reciprocal %112 {approx = true} : vector<8x128xf32> -> vector<8x128xf32>
    %114 = arith.mulf %112, %113 : vector<8x128xf32>
    %cst_59 = arith.constant 2.000000e+00 : f32
    %115 = vector.broadcast %cst_59 : f32 to vector<8x128xf32>
    %116 = arith.subf %115, %114 : vector<8x128xf32>
    %117 = arith.mulf %113, %116 : vector<8x128xf32>
    %c2_60 = arith.constant 2 : index
    %c0_61 = arith.constant 0 : index
    %c0_62 = arith.constant 0 : index
    %118 = vector.load %arg4[%c2_60, %c0_61, %c0_62] : memref<3x8x128xf32, #tpu.memory_space<vmem>>, vector<1x8x128xf32>
    %119 = vector.shape_cast %118 : vector<1x8x128xf32> to vector<8x128xf32>
    %120 = vector.shape_cast %117 : vector<8x128xf32> to vector<1x8x128xf32>
    tpu.vector_store %arg4[%c2_60, %c0_61, %c0_62], %120 {strides = array<i32>} : memref<3x8x128xf32, #tpu.memory_space<vmem>>, vector<1x8x128xf32>,
    return
  }
  func.func @transform_0(%arg0: i32) -> (i32, i32, i32) {
    %c0_i32 = arith.constant 0 : i32
    %c0_i32_0 = arith.constant 0 : i32
    %c0_i32_1 = arith.constant 0 : i32
    return %c0_i32, %arg0, %c0_i32_0 : i32, i32, i32
  }
  func.func @transform_1(%arg0: i32) -> (i32, i32) {
    %c0_i32 = arith.constant 0 : i32
    %c0_i32_0 = arith.constant 0 : i32
    %c0_i32_1 = arith.constant 0 : i32
    return %c0_i32, %c0_i32_0 : i32, i32
  }
  func.func @transform_2(%arg0: i32) -> i32 {
    %c0_i32 = arith.constant 0 : i32
    %c0_i32_0 = arith.constant 0 : i32
    return %c0_i32 : i32
  }
  func.func @transform_3(%arg0: i32) -> (i32, i32, i32) {
    %c0_i32 = arith.constant 0 : i32
    %c0_i32_0 = arith.constant 0 : i32
    %c0_i32_1 = arith.constant 0 : i32
    return %c0_i32, %arg0, %c0_i32_0 : i32, i32, i32
  }
}

</mosaic_0001>

<llo_original>
// kernel: tpu_custom_call.1
$region0: #{tpu_custom_call.1}
  #allocation0 [shape = 'u32[]', space=smem, size = 0x4, offset = 0x4, fixed_abs, tag = 'smem constant byte address 0x4 - core index']
  #allocation1 [shape = 'u32[144,128]{1,0:T(1,128)}', space=vmem, size = 0x12000, scoped, tag = 'internal scratch']
  %s0 = inlined_call_operand.hbm [shape: f32[5,8,128], index: 0, kind: input, shape index: {}]
  %s1 = inlined_call_operand.hbm [shape: f32[3,5], index: 1, kind: input, shape index: {}]
  %s2 = inlined_call_operand.vmem [shape: f32[3], index: 2, kind: input, shape index: {}]
  %s3 = inlined_call_operand.hbm [shape: f32[3,8,128], index: 3, kind: output, shape index: {}]
  %s4 = sld [smem:[#allocation0]]
  $region34: #{tpu_custom_call.1} parent=0
    _
  %s6 = ssub.s32 1, %s4
  %s7 = scalar_select 0, %s6, %s4
  $region1: #{tpu_custom_call.1} parent=0
    #allocation2 [shape = 'u8[20480]{0}', space=vmem, size = 0x5000, scoped, tag = 'input window, operand 0, single buffered']
    #allocation3 [shape = 's32[1]{0}', space=sflag, size = 0x4, scoped, tag = 'scoped memory for tpu_custom_call.1']
    #allocation4 [shape = 's32[1]{0}', space=sflag, size = 0x4, scoped, tag = 'scoped memory for tpu_custom_call.1']
    #allocation5 [shape = 's32[1]{0}', space=sflag, size = 0x4, scoped, tag = 'scoped memory for tpu_custom_call.1']
    #allocation6 [shape = 's32[1]{0}', space=sflag, size = 0x4, scoped, tag = 'scoped memory for tpu_custom_call.1']
    #allocation7 [shape = 'u8[2048]{0}', space=smem, size = 0x800, scoped, tag = 'input window, operand 1, single buffered']
    #allocation8 [shape = 'u8[512]{0}', space=smem, size = 0x200, scoped, tag = 'input window, operand 2, single buffered']
    #allocation9 [shape = 'u8[12288]{0}', space=vmem, size = 0x3000, scoped, tag = 'output window, operand 0, single buffered']
    %8 = vsyncpa [#allocation3], 0
    %9 = vsyncpa [#allocation5], 0
    %10 = vsyncpa [#allocation6], 0
    %11 = vsyncpa [#allocation4], 0
    // Predicated region
    $region2: #{tpu_custom_call.1} parent=1 // pred_check
      _
    $region3: #{tpu_custom_call.1} parent=1 // pred_check_branch
      %13 = sbr.rel (0) target = $region5
    $region4: #{tpu_custom_call.1} parent=1 // pred_region
      %s15 = ssub.s32 640, 640
      %16 = vsyncadd [#allocation3], %s15
      %s17 = sshll.u32 [#allocation2], 4
      %s18 = int_to_ptr.vmem [resolvable:$true] %s17
      %23 = dma.hbm_to_vmem [thread:$0]  %s0, 640, %s18, [#allocation3], 128, 128, 8
    $region5: #{tpu_custom_call.1} parent=1 // pred_fallthru
      _
    // Predicated region
    $region6: #{tpu_custom_call.1} parent=1 // pred_check
      _
    $region7: #{tpu_custom_call.1} parent=1 // pred_check_branch
      %25 = sbr.rel (0) target = $region9
    $region8: #{tpu_custom_call.1} parent=1 // pred_region
      %s27 = ssub.s32 64, 64
      %28 = vsyncadd [#allocation5], %s27
      %31 = dma.hbm_to_smem %s1, 64, [#allocation7], [#allocation5]
    $region9: #{tpu_custom_call.1} parent=1 // pred_fallthru
      _
    // Predicated region
    $region10: #{tpu_custom_call.1} parent=1 // pred_check
      _
    $region11: #{tpu_custom_call.1} parent=1 // pred_check_branch
      %33 = sbr.rel (0) target = $region13
    $region12: #{tpu_custom_call.1} parent=1 // pred_region
      %s35 = ssub.s32 16, 16
      %36 = vsyncadd [#allocation6], %s35
      %s38 = sshll.u32 %s2, 4
      %s39 = int_to_ptr.vmem [resolvable:$true] %s38
      %41 = dma.vmem_to_smem %s39, 16, [#allocation8], [#allocation6]
    $region13: #{tpu_custom_call.1} parent=1 // pred_fallthru
      _
    // Predicated region
    $region14: #{tpu_custom_call.1} parent=1 // pred_check
      _
    $region15: #{tpu_custom_call.1} parent=1 // pred_check_branch
      %43 = sbr.rel (0) target = $region17
    $region16: #{tpu_custom_call.1} parent=1 // pred_region
      %44 = dma.done [#allocation3], 640
    $region17: #{tpu_custom_call.1} parent=1 // pred_fallthru
      _
    // Predicated region
    $region18: #{tpu_custom_call.1} parent=1 // pred_check
      _
    $region19: #{tpu_custom_call.1} parent=1 // pred_check_branch
      %46 = sbr.rel (0) target = $region21
    $region20: #{tpu_custom_call.1} parent=1 // pred_region
      %47 = dma.done [#allocation5], 64
    $region21: #{tpu_custom_call.1} parent=1 // pred_fallthru
      _
    // Predicated region
    $region22: #{tpu_custom_call.1} parent=1 // pred_check
      _
    $region23: #{tpu_custom_call.1} parent=1 // pred_check_branch
      %49 = sbr.rel (0) target = $region25
    $region24: #{tpu_custom_call.1} parent=1 // pred_region
      %50 = dma.done [#allocation6], 16
    $region25: #{tpu_custom_call.1} parent=1 // pred_fallthru
      _
    %51 = sfence
    %v52 = vld [vmem:[#allocation2] sm:$0xff]
    %s53 = scalar_lea.vmem [#allocation2], 8
    %v54 = vld [vmem:[%s53] sm:$0xff]
    %s55 = scalar_lea.vmem [#allocation2], 16
    %v56 = vld [vmem:[%s55] sm:$0xff]
    %s57 = scalar_lea.vmem [#allocation2], 24
    %v58 = vld [vmem:[%s57] sm:$0xff]
    %s59 = scalar_lea.vmem [#allocation2], 32
    %v60 = vld [vmem:[%s59] sm:$0xff]
    %s61 = sld [smem:[#allocation7]]
    %v62 = vstv %s61
    %v63 = vmul.f32 %v52, %v62
    %s64 = sld [smem:[#allocation7 + $0x1]]
    %v65 = vstv %s64
    %v66 = vmul.f32 %v54, %v65
    %v67 = vadd.f32 %v63, %v66
    %s68 = sld [smem:[#allocation7 + $0x2]]
    %v69 = vstv %s68
    %v70 = vmul.f32 %v56, %v69
    %v71 = vadd.f32 %v67, %v70
    %s72 = sld [smem:[#allocation7 + $0x3]]
    %v73 = vstv %s72
    %v74 = vmul.f32 %v58, %v73
    %v75 = vadd.f32 %v71, %v74
    %s76 = sld [smem:[#allocation7 + $0x4]]
    %v77 = vstv %s76
    %v78 = vmul.f32 %v60, %v77
    %v79 = vadd.f32 %v75, %v78
    %s80 = sld [smem:[#allocation8]]
    %v81 = vstv %s80
    %v82 = vadd.f32 %v79, %v81
    %v83 = vmax.f32 %v82, -30.0
    %v84 = vsub.f32 0.0, %v83
    %v85 = vmul.f32 %v84, 1.442695
    %v86 = vpow.pop %v85
    %v87 = vadd.f32 %v86, 1.0
    %v88 = vrcp.pop %v87
    %v89 = vmul.f32 %v87, %v88
    %v90 = vsub.f32 2.0, %v89
    %v91 = vmul.f32 %v88, %v90
    %92 = vst [vmem:[#allocation9] sm:$0xff] %v91
    %s93 = sld [smem:[#allocation7 + $0x80]]
    %v94 = vstv %s93
    %v95 = vmul.f32 %v52, %v94
    %s96 = sld [smem:[#allocation7 + $0x81]]
    %v97 = vstv %s96
    %v98 = vmul.f32 %v54, %v97
    %v99 = vadd.f32 %v95, %v98
    %s100 = sld [smem:[#allocation7 + $0x82]]
    %v101 = vstv %s100
    %v102 = vmul.f32 %v56, %v101
    %v103 = vadd.f32 %v99, %v102
    %s104 = sld [smem:[#allocation7 + $0x83]]
    %v105 = vstv %s104
    %v106 = vmul.f32 %v58, %v105
    %v107 = vadd.f32 %v103, %v106
    %s108 = sld [smem:[#allocation7 + $0x84]]
    %v109 = vstv %s108
    %v110 = vmul.f32 %v60, %v109
    %v111 = vadd.f32 %v107, %v110
    %s112 = sld [smem:[#allocation8 + $0x1]]
    %v113 = vstv %s112
    %v114 = vadd.f32 %v111, %v113
    %v115 = vmax.f32 %v114, -30.0
    %v116 = vsub.f32 0.0, %v115
    %v117 = vmul.f32 %v116, 1.442695
    %v118 = vpow.pop %v117
    %v119 = vadd.f32 %v118, 1.0
    %v120 = vrcp.pop %v119
    %v121 = vmul.f32 %v119, %v120
    %v122 = vsub.f32 2.0, %v121
    %v123 = vmul.f32 %v120, %v122
    %s124 = scalar_lea.vmem [#allocation9], 8
    %125 = vst [vmem:[%s124] sm:$0xff] %v123
    %s126 = sld [smem:[#allocation7 + $0x100]]
    %v127 = vstv %s126
    %v128 = vmul.f32 %v52, %v127
    %s129 = sld [smem:[#allocation7 + $0x101]]
    %v130 = vstv %s129
    %v131 = vmul.f32 %v54, %v130
    %v132 = vadd.f32 %v128, %v131
    %s133 = sld [smem:[#allocation7 + $0x102]]
    %v134 = vstv %s133
    %v135 = vmul.f32 %v56, %v134
    %v136 = vadd.f32 %v132, %v135
    %s137 = sld [smem:[#allocation7 + $0x103]]
    %v138 = vstv %s137
    %v139 = vmul.f32 %v58, %v138
    %v140 = vadd.f32 %v136, %v139
    %s141 = sld [smem:[#allocation7 + $0x104]]
    %v142 = vstv %s141
    %v143 = vmul.f32 %v60, %v142
    %v144 = vadd.f32 %v140, %v143
    %s145 = sld [smem:[#allocation8 + $0x2]]
    %v146 = vstv %s145
    %v147 = vadd.f32 %v144, %v146
    %v148 = vmax.f32 %v147, -30.0
    %v149 = vsub.f32 0.0, %v148
    %v150 = vmul.f32 %v149, 1.442695
    %v151 = vpow.pop %v150
    %v152 = vadd.f32 %v151, 1.0
    %v153 = vrcp.pop %v152
    %v154 = vmul.f32 %v152, %v153
    %v155 = vsub.f32 2.0, %v154
    %v156 = vmul.f32 %v153, %v155
    %s157 = scalar_lea.vmem [#allocation9], 16
    %158 = vst [vmem:[%s157] sm:$0xff] %v156
    // Predicated region
    $region26: #{tpu_custom_call.1} parent=1 // pred_check
      _
    $region27: #{tpu_custom_call.1} parent=1 // pred_check_branch
      %160 = sbr.rel (0) target = $region29
    $region28: #{tpu_custom_call.1} parent=1 // pred_region
      %s162 = ssub.s32 384, 384
      %163 = vsyncadd [#allocation4], %s162
      %s164 = sshll.u32 [#allocation9], 4
      %s165 = int_to_ptr.vmem [resolvable:$true] %s164
      %170 = dma.vmem_to_hbm [thread:$0]  %s165, 384, %s3, [#allocation4], 128, 128, 8
    $region29: #{tpu_custom_call.1} parent=1 // pred_fallthru
      _
    // Predicated region
    $region30: #{tpu_custom_call.1} parent=1 // pred_check
      _
    $region31: #{tpu_custom_call.1} parent=1 // pred_check_branch
      %172 = sbr.rel (0) target = $region33
    $region32: #{tpu_custom_call.1} parent=1 // pred_region
      %173 = dma.done [#allocation4], 384
    $region33: #{tpu_custom_call.1} parent=1 // pred_fallthru
      _
    %174 = vsyncpa [#allocation3], 1
    %175 = vsyncpa [#allocation4], 1
    %176 = vsyncpa [#allocation5], 1
    %177 = vsyncpa [#allocation6], 1

</llo_original>
